<compile_context>
chip_gen: v6e
topology: v6e:2x2x1
jax: 0.10.0
libtpu: 0.0.40
codegen_flags: <defaults>
</compile_context>

<pallas_src>
import math

import jax
import jax.numpy as jnp
from jax.experimental import pallas as pl
from jax.experimental.pallas import tpu as pltpu

_LANE = 128


def _make_pool_kernel(pooling_type: str, ts: int, s_total: int, num_s_tiles: int):
    """Build a kernel reducing (B, TC, TS) spatial tiles into a (B, TC) output."""
    is_avg = pooling_type == "avg"
    fill = 0.0 if is_avg else -jnp.inf
    inv_s = 1.0 / s_total
    rem = s_total % ts  # valid elements in the last (ragged) tile; 0 == all full

    def combine(a, b):
        return a + b if is_avg else jnp.maximum(a, b)

    def accumulate(x_ref, acc_ref, valid):
        # Fold the first `valid` spatial elements of the (B, TC, TS) block into
        # the (B, TC, 128) accumulator using lane-preserving VPU ops only; at
        # most one (compile-time known) column needs masking.
        n_full = valid // _LANE
        r = valid % _LANE
        partial = None
        for k in range(n_full):
            col = x_ref[:, :, pl.ds(k * _LANE, _LANE)].astype(jnp.float32)
            partial = col if partial is None else combine(partial, col)
        if r:
            col = x_ref[:, :, pl.ds(n_full * _LANE, _LANE)].astype(jnp.float32)
            lane = jax.lax.broadcasted_iota(jnp.int32, col.shape, 2)
            col = jnp.where(lane < r, col, fill)
            partial = col if partial is None else combine(partial, col)
        acc_ref[...] = combine(acc_ref[...], partial)

    def kernel(x_ref, o_ref, acc_ref):
        s = pl.program_id(1)                  # spatial tile (reduction, innermost)
        last = pl.num_programs(1) - 1

        @pl.when(s == 0)
        def _():
            if is_avg:
                acc_ref[...] = jnp.zeros_like(acc_ref)
            else:
                acc_ref[...] = jnp.full_like(acc_ref, -jnp.inf)

        if rem == 0:
            accumulate(x_ref, acc_ref, ts)
        elif num_s_tiles == 1:
            accumulate(x_ref, acc_ref, rem)
        else:
            @pl.when(s != last)
            def _():
                accumulate(x_ref, acc_ref, ts)

            @pl.when(s == last)
            def _():
                accumulate(x_ref, acc_ref, rem)

        @pl.when(s == last)
        def _():
            if is_avg:
                # Single cross-lane reduce + single 1/S scale at finalize only.
                red = jnp.sum(acc_ref[...], axis=-1) * inv_s
            else:
                red = jnp.max(acc_ref[...], axis=-1)
            o_ref[...] = red.astype(o_ref.dtype)

    return kernel


def _pool_level(x, pooling_type: str, max_block_bytes: int):
    """AdaptiveAvg/MaxPool2d(1) for one NCHW feature map -> (B, C) via Pallas."""
    B, C = x.shape[:2]
    S = math.prod(x.shape[2:])
    xf = x.reshape(B, C, S)  # contiguous trailing-dim reshape: no data movement

    # Channel tile: 128 keeps the (B, TC) output lane-dense and gives the
    # leading "parallel" axis >= 2 tiles (both v7x cores get work) when C >= 256.
    TC = _LANE if (C % _LANE == 0 and C > _LANE) else C

    # Spatial tile: fixed multiple of 128 sized from the per-block VMEM budget,
    # capped at 128 lane-columns (keeps the unrolled column loop short).
    # Ragged tails are handled by the cdiv grid + in-kernel masking, never by
    # shrinking TS to a divisor of S.
    itemsize = jnp.dtype(x.dtype).itemsize
    ts_cap = (max_block_bytes // max(1, B * TC * itemsize)) // _LANE * _LANE
    ts_cap = max(_LANE, min(ts_cap, 128 * _LANE))
    TS = min(ts_cap, pl.cdiv(S, _LANE) * _LANE)

    num_c = C // TC               # exact by construction of TC
    num_s = pl.cdiv(S, TS)
    kernel = _make_pool_kernel(pooling_type, TS, S, num_s)

    cost = pl.CostEstimate(
        flops=B * C * S,          # one add / cmp per input element
        transcendentals=0,
        bytes_accessed=B * C * S * itemsize + B * C * itemsize)

    return pl.pallas_call(
        kernel,
        grid=(num_c, num_s),      # reduction (spatial) axis innermost
        out_shape=jax.ShapeDtypeStruct((B, C), x.dtype),
        in_specs=[pl.BlockSpec((B, TC, TS), lambda c, s: (0, c, s))],
        out_specs=pl.BlockSpec((B, TC), lambda c, s: (0, c)),
        scratch_shapes=[pltpu.VMEM((B, TC, _LANE), jnp.float32)],
        compiler_params=pltpu.CompilerParams(
            dimension_semantics=("parallel", "arbitrary"),
            vmem_limit_bytes=32 * 1024 * 1024),
        cost_estimate=cost,
    )(xf)


def bilinear_pooling_forward(features, pooling_type: str = "avg", *,
                             min_pallas_spatial: int = 2048,
                             max_block_bytes: int = 8 * 1024 * 1024):
    if pooling_type not in ("avg", "max"):
        raise ValueError(f"Unknown pooling function: {pooling_type}")
    pooled = []
    for key in features:
        x = features[key]
        B, C = x.shape[:2]
        S = math.prod(x.shape[2:])
        if S < min_pallas_spatial:
            # Tiny pyramid level: pallas_call launch overhead exceeds its DMA
            # time, so reduce it with plain XLA ops (same semantics).
            xf = x.reshape(B, C, S)
            pooled.append(xf.mean(axis=-1) if pooling_type == "avg"
                          else xf.max(axis=-1))
        else:
            pooled.append(_pool_level(x, pooling_type, max_block_bytes))
    # TODO(synk): the reference forward ends with `pass` after torch.stack, so
    # the actual bilinear (outer-product) combination is undefined; we return
    # the stacked pooled features (B, K, C), which is everything it computes.
    return jnp.stack(pooled, axis=1)


if __name__ == "__main__":
    key = jax.random.PRNGKey(0)
    k1, k2, k3 = jax.random.split(key, 3)

    # Small FPN-like multi-level feature dict (NCHW), batch=2, channels=4.
    # "p2" is sized so it takes the Pallas path (S = 3360, not a 128 multiple,
    # so the ragged-tail masking is exercised); the tiny levels take the
    # jnp fallback by default.
    features = {
        "p2": jax.random.normal(k1, (2, 4, 56, 60), dtype=jnp.float32),
        "p3": jax.random.normal(k2, (2, 4, 8, 8), dtype=jnp.float32),
        "p4": jax.random.normal(k3, (2, 4, 4, 4), dtype=jnp.float32),
    }

    # Pure-JAX references (AdaptiveAvg/MaxPool2d(1) == reduce over H, W).
    ref_avg = jnp.stack([f.mean(axis=(2, 3)) for f in features.values()], axis=1)
    ref_max = jnp.stack([f.max(axis=(2, 3)) for f in features.values()], axis=1)

    # Default configuration (large level via Pallas, tiny levels via XLA).
    out_avg = jax.block_until_ready(bilinear_pooling_forward(features, "avg"))
    out_max = jax.block_until_ready(bilinear_pooling_forward(features, "max"))
    assert out_avg.shape == (2, 3, 4) and out_max.shape == (2, 3, 4)
    assert jnp.allclose(out_avg, ref_avg, atol=1e-5, rtol=1e-5)
    assert jnp.allclose(out_max, ref_max, atol=1e-5, rtol=1e-5)

    # Force every level through the Pallas kernel with a tiny block budget so
    # the multi-step spatial accumulation + tail masking paths are exercised.
    out_avg2 = jax.block_until_ready(bilinear_pooling_forward(
        features, "avg", min_pallas_spatial=0, max_block_bytes=64 * 1024))
    out_max2 = jax.block_until_ready(bilinear_pooling_forward(
        features, "max", min_pallas_spatial=0, max_block_bytes=64 * 1024))
    assert jnp.allclose(out_avg2, ref_avg, atol=1e-5, rtol=1e-5)
    assert jnp.allclose(out_max2, ref_max, atol=1e-5, rtol=1e-5)

    print("KERNEL_OK")
</pallas_src>

<mosaic_0001>
module attributes {stable_mosaic.version = 11 : i64} {
  func.func @kernel(%arg0: i32, %arg1: i32, %arg2: memref<2x4x3456xf32, #tpu.memory_space<vmem>>, %arg3: memref<2x4xf32, #tpu.memory_space<vmem>>, %arg4: memref<2x4x128xf32, #tpu.memory_space<vmem>>) attributes {dimension_semantics = [#tpu.dimension_semantics<parallel>, #tpu.dimension_semantics<arbitrary>], iteration_bounds = array<i64: 1, 1>, scalar_prefetch = 0 : i64, scratch_operands = 1 : i64, tpu.core_type = #tpu.core_type<tc>, window_params = [{transform_indices = @transform_0, window_bounds = array<i64: 2, 4, 3456>}, {transform_indices = @transform_1, window_bounds = array<i64: 2, 4>}]} {
    %c0_i32 = arith.constant 0 : i32
    %0 = arith.cmpi eq, %arg1, %c0_i32 : i32
    %1 = arith.extui %0 : i1 to i32
    %c0_i32_0 = arith.constant 0 : i32
    %2 = arith.cmpi ne, %1, %c0_i32_0 : i32
    scf.if %2 {
      %cst_63 = arith.constant 0.000000e+00 : f32
      %67 = vector.broadcast %cst_63 : f32 to vector<2x4x128xf32>
      %c0_64 = arith.constant 0 : index
      %c0_65 = arith.constant 0 : index
      %c0_66 = arith.constant 0 : index
      %68 = vector.load %arg4[%c0_64, %c0_65, %c0_66] : memref<2x4x128xf32, #tpu.memory_space<vmem>>, vector<2x4x128xf32>
      tpu.vector_store %arg4[%c0_64, %c0_65, %c0_66], %67 {strides = array<i32>} : memref<2x4x128xf32, #tpu.memory_space<vmem>>, vector<2x4x128xf32>,
    } else {
    }
    %c0 = arith.constant 0 : index
    %c0_1 = arith.constant 0 : index
    %c0_2 = arith.constant 0 : index
    %3 = vector.load %arg2[%c0, %c0_1, %c0_2] : memref<2x4x3456xf32, #tpu.memory_space<vmem>>, vector<2x4x128xf32>
    %c0_3 = arith.constant 0 : index
    %c0_4 = arith.constant 0 : index
    %c128 = arith.constant 128 : index
    %4 = vector.load %arg2[%c0_3, %c0_4, %c128] : memref<2x4x3456xf32, #tpu.memory_space<vmem>>, vector<2x4x128xf32>
    %5 = arith.addf %3, %4 : vector<2x4x128xf32>
    %c0_5 = arith.constant 0 : index
    %c0_6 = arith.constant 0 : index
    %c256 = arith.constant 256 : index
    %6 = vector.load %arg2[%c0_5, %c0_6, %c256] : memref<2x4x3456xf32, #tpu.memory_space<vmem>>, vector<2x4x128xf32>
    %7 = arith.addf %5, %6 : vector<2x4x128xf32>
    %c0_7 = arith.constant 0 : index
    %c0_8 = arith.constant 0 : index
    %c384 = arith.constant 384 : index
    %8 = vector.load %arg2[%c0_7, %c0_8, %c384] : memref<2x4x3456xf32, #tpu.memory_space<vmem>>, vector<2x4x128xf32>
    %9 = arith.addf %7, %8 : vector<2x4x128xf32>
    %c0_9 = arith.constant 0 : index
    %c0_10 = arith.constant 0 : index
    %c512 = arith.constant 512 : index
    %10 = vector.load %arg2[%c0_9, %c0_10, %c512] : memref<2x4x3456xf32, #tpu.memory_space<vmem>>, vector<2x4x128xf32>
    %11 = arith.addf %9, %10 : vector<2x4x128xf32>
    %c0_11 = arith.constant 0 : index
    %c0_12 = arith.constant 0 : index
    %c640 = arith.constant 640 : index
    %12 = vector.load %arg2[%c0_11, %c0_12, %c640] : memref<2x4x3456xf32, #tpu.memory_space<vmem>>, vector<2x4x128xf32>
    %13 = arith.addf %11, %12 : vector<2x4x128xf32>
    %c0_13 = arith.constant 0 : index
    %c0_14 = arith.constant 0 : index
    %c768 = arith.constant 768 : index
    %14 = vector.load %arg2[%c0_13, %c0_14, %c768] : memref<2x4x3456xf32, #tpu.memory_space<vmem>>, vector<2x4x128xf32>
    %15 = arith.addf %13, %14 : vector<2x4x128xf32>
    %c0_15 = arith.constant 0 : index
    %c0_16 = arith.constant 0 : index
    %c896 = arith.constant 896 : index
    %16 = vector.load %arg2[%c0_15, %c0_16, %c896] : memref<2x4x3456xf32, #tpu.memory_space<vmem>>, vector<2x4x128xf32>
    %17 = arith.addf %15, %16 : vector<2x4x128xf32>
    %c0_17 = arith.constant 0 : index
    %c0_18 = arith.constant 0 : index
    %c1024 = arith.constant 1024 : index
    %18 = vector.load %arg2[%c0_17, %c0_18, %c1024] : memref<2x4x3456xf32, #tpu.memory_space<vmem>>, vector<2x4x128xf32>
    %19 = arith.addf %17, %18 : vector<2x4x128xf32>
    %c0_19 = arith.constant 0 : index
    %c0_20 = arith.constant 0 : index
    %c1152 = arith.constant 1152 : index
    %20 = vector.load %arg2[%c0_19, %c0_20, %c1152] : memref<2x4x3456xf32, #tpu.memory_space<vmem>>, vector<2x4x128xf32>
    %21 = arith.addf %19, %20 : vector<2x4x128xf32>
    %c0_21 = arith.constant 0 : index
    %c0_22 = arith.constant 0 : index
    %c1280 = arith.constant 1280 : index
    %22 = vector.load %arg2[%c0_21, %c0_22, %c1280] : memref<2x4x3456xf32, #tpu.memory_space<vmem>>, vector<2x4x128xf32>
    %23 = arith.addf %21, %22 : vector<2x4x128xf32>
    %c0_23 = arith.constant 0 : index
    %c0_24 = arith.constant 0 : index
    %c1408 = arith.constant 1408 : index
    %24 = vector.load %arg2[%c0_23, %c0_24, %c1408] : memref<2x4x3456xf32, #tpu.memory_space<vmem>>, vector<2x4x128xf32>
    %25 = arith.addf %23, %24 : vector<2x4x128xf32>
    %c0_25 = arith.constant 0 : index
    %c0_26 = arith.constant 0 : index
    %c1536 = arith.constant 1536 : index
    %26 = vector.load %arg2[%c0_25, %c0_26, %c1536] : memref<2x4x3456xf32, #tpu.memory_space<vmem>>, vector<2x4x128xf32>
    %27 = arith.addf %25, %26 : vector<2x4x128xf32>
    %c0_27 = arith.constant 0 : index
    %c0_28 = arith.constant 0 : index
    %c1664 = arith.constant 1664 : index
    %28 = vector.load %arg2[%c0_27, %c0_28, %c1664] : memref<2x4x3456xf32, #tpu.memory_space<vmem>>, vector<2x4x128xf32>
    %29 = arith.addf %27, %28 : vector<2x4x128xf32>
    %c0_29 = arith.constant 0 : index
    %c0_30 = arith.constant 0 : index
    %c1792 = arith.constant 1792 : index
    %30 = vector.load %arg2[%c0_29, %c0_30, %c1792] : memref<2x4x3456xf32, #tpu.memory_space<vmem>>, vector<2x4x128xf32>
    %31 = arith.addf %29, %30 : vector<2x4x128xf32>
    %c0_31 = arith.constant 0 : index
    %c0_32 = arith.constant 0 : index
    %c1920 = arith.constant 1920 : index
    %32 = vector.load %arg2[%c0_31, %c0_32, %c1920] : memref<2x4x3456xf32, #tpu.memory_space<vmem>>, vector<2x4x128xf32>
    %33 = arith.addf %31, %32 : vector<2x4x128xf32>
    %c0_33 = arith.constant 0 : index
    %c0_34 = arith.constant 0 : index
    %c2048 = arith.constant 2048 : index
    %34 = vector.load %arg2[%c0_33, %c0_34, %c2048] : memref<2x4x3456xf32, #tpu.memory_space<vmem>>, vector<2x4x128xf32>
    %35 = arith.addf %33, %34 : vector<2x4x128xf32>
    %c0_35 = arith.constant 0 : index
    %c0_36 = arith.constant 0 : index
    %c2176 = arith.constant 2176 : index
    %36 = vector.load %arg2[%c0_35, %c0_36, %c2176] : memref<2x4x3456xf32, #tpu.memory_space<vmem>>, vector<2x4x128xf32>
    %37 = arith.addf %35, %36 : vector<2x4x128xf32>
    %c0_37 = arith.constant 0 : index
    %c0_38 = arith.constant 0 : index
    %c2304 = arith.constant 2304 : index
    %38 = vector.load %arg2[%c0_37, %c0_38, %c2304] : memref<2x4x3456xf32, #tpu.memory_space<vmem>>, vector<2x4x128xf32>
    %39 = arith.addf %37, %38 : vector<2x4x128xf32>
    %c0_39 = arith.constant 0 : index
    %c0_40 = arith.constant 0 : index
    %c2432 = arith.constant 2432 : index
    %40 = vector.load %arg2[%c0_39, %c0_40, %c2432] : memref<2x4x3456xf32, #tpu.memory_space<vmem>>, vector<2x4x128xf32>
    %41 = arith.addf %39, %40 : vector<2x4x128xf32>
    %c0_41 = arith.constant 0 : index
    %c0_42 = arith.constant 0 : index
    %c2560 = arith.constant 2560 : index
    %42 = vector.load %arg2[%c0_41, %c0_42, %c2560] : memref<2x4x3456xf32, #tpu.memory_space<vmem>>, vector<2x4x128xf32>
    %43 = arith.addf %41, %42 : vector<2x4x128xf32>
    %c0_43 = arith.constant 0 : index
    %c0_44 = arith.constant 0 : index
    %c2688 = arith.constant 2688 : index
    %44 = vector.load %arg2[%c0_43, %c0_44, %c2688] : memref<2x4x3456xf32, #tpu.memory_space<vmem>>, vector<2x4x128xf32>
    %45 = arith.addf %43, %44 : vector<2x4x128xf32>
    %c0_45 = arith.constant 0 : index
    %c0_46 = arith.constant 0 : index
    %c2816 = arith.constant 2816 : index
    %46 = vector.load %arg2[%c0_45, %c0_46, %c2816] : memref<2x4x3456xf32, #tpu.memory_space<vmem>>, vector<2x4x128xf32>
    %47 = arith.addf %45, %46 : vector<2x4x128xf32>
    %c0_47 = arith.constant 0 : index
    %c0_48 = arith.constant 0 : index
    %c2944 = arith.constant 2944 : index
    %48 = vector.load %arg2[%c0_47, %c0_48, %c2944] : memref<2x4x3456xf32, #tpu.memory_space<vmem>>, vector<2x4x128xf32>
    %49 = arith.addf %47, %48 : vector<2x4x128xf32>
    %c0_49 = arith.constant 0 : index
    %c0_50 = arith.constant 0 : index
    %c3072 = arith.constant 3072 : index
    %50 = vector.load %arg2[%c0_49, %c0_50, %c3072] : memref<2x4x3456xf32, #tpu.memory_space<vmem>>, vector<2x4x128xf32>
    %51 = arith.addf %49, %50 : vector<2x4x128xf32>
    %c0_51 = arith.constant 0 : index
    %c0_52 = arith.constant 0 : index
    %c3200 = arith.constant 3200 : index
    %52 = vector.load %arg2[%c0_51, %c0_52, %c3200] : memref<2x4x3456xf32, #tpu.memory_space<vmem>>, vector<2x4x128xf32>
    %53 = arith.addf %51, %52 : vector<2x4x128xf32>
    %c0_53 = arith.constant 0 : index
    %c0_54 = arith.constant 0 : index
    %c3328 = arith.constant 3328 : index
    %54 = vector.load %arg2[%c0_53, %c0_54, %c3328] : memref<2x4x3456xf32, #tpu.memory_space<vmem>>, vector<2x4x128xf32>
    %55 = tpu.iota {dimensions = array<i32: 2>} : vector<2x4x128xi32>
    %c32_i32 = arith.constant 32 : i32
    %56 = vector.broadcast %c32_i32 : i32 to vector<2x4x128xi32>
    %57 = arith.cmpi slt, %55, %56 : vector<2x4x128xi32>
    %cst = arith.constant 0.000000e+00 : f32
    %58 = vector.broadcast %cst : f32 to vector<2x4x128xf32>
    %59 = arith.select %57, %54, %58 : vector<2x4x128xi1>, vector<2x4x128xf32>
    %60 = arith.addf %53, %59 : vector<2x4x128xf32>
    %c0_55 = arith.constant 0 : index
    %c0_56 = arith.constant 0 : index
    %c0_57 = arith.constant 0 : index
    %61 = vector.load %arg4[%c0_55, %c0_56, %c0_57] : memref<2x4x128xf32, #tpu.memory_space<vmem>>, vector<2x4x128xf32>
    %62 = arith.addf %61, %60 : vector<2x4x128xf32>
    %c0_58 = arith.constant 0 : index
    %c0_59 = arith.constant 0 : index
    %c0_60 = arith.constant 0 : index
    %63 = vector.load %arg4[%c0_58, %c0_59, %c0_60] : memref<2x4x128xf32, #tpu.memory_space<vmem>>, vector<2x4x128xf32>
    tpu.vector_store %arg4[%c0_58, %c0_59, %c0_60], %62 {strides = array<i32>} : memref<2x4x128xf32, #tpu.memory_space<vmem>>, vector<2x4x128xf32>,
    %c0_i32_61 = arith.constant 0 : i32
    %64 = arith.cmpi eq, %arg1, %c0_i32_61 : i32
    %65 = arith.extui %64 : i1 to i32
    %c0_i32_62 = arith.constant 0 : i32
    %66 = arith.cmpi ne, %65, %c0_i32_62 : i32
    scf.if %66 {
      %c0_63 = arith.constant 0 : index
      %c0_64 = arith.constant 0 : index
      %c0_65 = arith.constant 0 : index
      %67 = vector.load %arg4[%c0_63, %c0_64, %c0_65] : memref<2x4x128xf32, #tpu.memory_space<vmem>>, vector<2x4x128xf32>
      %cst_66 = arith.constant dense<0.000000e+00> : vector<2x4xf32>
      %68 = vector.multi_reduction <add>, %67, %cst_66 [2] : vector<2x4x128xf32> to vector<2x4xf32>
      %cst_67 = arith.constant 2.97619059E-4 : f32
      %69 = vector.broadcast %cst_67 : f32 to vector<2x4xf32>
      %70 = arith.mulf %68, %69 : vector<2x4xf32>
      %c0_68 = arith.constant 0 : index
      %c0_69 = arith.constant 0 : index
      %71 = vector.load %arg3[%c0_68, %c0_69] : memref<2x4xf32, #tpu.memory_space<vmem>>, vector<2x4xf32>
      tpu.vector_store %arg3[%c0_68, %c0_69], %70 {strides = array<i32>} : memref<2x4xf32, #tpu.memory_space<vmem>>, vector<2x4xf32>,
    } else {
    }
    return
  }
  func.func @transform_0(%arg0: i32, %arg1: i32) -> (i32, i32, i32) {
    %c0_i32 = arith.constant 0 : i32
    %c0_i32_0 = arith.constant 0 : i32
    return %c0_i32, %arg0, %arg1 : i32, i32, i32
  }
  func.func @transform_1(%arg0: i32, %arg1: i32) -> (i32, i32) {
    %c0_i32 = arith.constant 0 : i32
    %c0_i32_0 = arith.constant 0 : i32
    return %c0_i32, %arg0 : i32, i32
  }
}

</mosaic_0001>

<llo_original>
// kernel: tpu_custom_call.1
$region0: #{tpu_custom_call.1}
  #allocation0 [shape = 'u32[]', space=smem, size = 0x4, offset = 0x4, fixed_abs, tag = 'smem constant byte address 0x4 - core index']
  #allocation1 [shape = 'u32[144,128]{1,0:T(1,128)}', space=vmem, size = 0x12000, scoped, tag = 'internal scratch']
  #allocation2 [shape = 'f32[2,4,128]{2,1,0:T(4,128)}', space=vmem, size = 0x1000, scoped, tag = 'scratch operand']
  %s0 = inlined_call_operand.hbm [shape: f32[2,4,3360], index: 0, kind: input, shape index: {}]
  %s1 = inlined_call_operand.hbm [shape: f32[2,4], index: 1, kind: output, shape index: {}]
  %s2 = sld [smem:[#allocation0]]
  $region26: #{tpu_custom_call.1} parent=0
    _
  %s4 = ssub.s32 1, %s2
  %s5 = scalar_select 0, %s4, %s2
  $region1: #{tpu_custom_call.1} parent=0
    #allocation3 [shape = 'u8[110592]{0}', space=vmem, size = 0x1b000, scoped, tag = 'input window, operand 0, single buffered']
    #allocation4 [shape = 's32[1]{0}', space=sflag, size = 0x4, scoped, tag = 'scoped memory for tpu_custom_call.1']
    #allocation5 [shape = 's32[1]{0}', space=sflag, size = 0x4, scoped, tag = 'scoped memory for tpu_custom_call.1']
    #allocation6 [shape = 'u8[1024]{0}', space=vmem, size = 0x400, scoped, tag = 'output window, operand 0, single buffered']
    %6 = vsyncpa [#allocation4], 0
    %7 = vsyncpa [#allocation5], 0
    // Predicated region
    $region2: #{tpu_custom_call.1} parent=1 // pred_check
      _
    $region3: #{tpu_custom_call.1} parent=1 // pred_check_branch
      %9 = sbr.rel (0) target = $region5
    $region4: #{tpu_custom_call.1} parent=1 // pred_region
      %s11 = ssub.s32 3456, 3456
      %12 = vsyncadd [#allocation4], %s11
      %s13 = sshll.u32 [#allocation3], 4
      %s14 = int_to_ptr.vmem [resolvable:$true] %s13
      %19 = dma.hbm_to_vmem [thread:$0]  %s0, 3456, %s14, [#allocation4], 1728, 1728, 108
    $region5: #{tpu_custom_call.1} parent=1 // pred_fallthru
      _
    // Predicated region
    $region6: #{tpu_custom_call.1} parent=1 // pred_check
      _
    $region7: #{tpu_custom_call.1} parent=1 // pred_check_branch
      %21 = sbr.rel (0) target = $region9
    $region8: #{tpu_custom_call.1} parent=1 // pred_region
      %22 = dma.done [#allocation4], 3456
    $region9: #{tpu_custom_call.1} parent=1 // pred_fallthru
      _
    %p23 = scmp.eq.s32.totalorder 0, 0
    // Predicated region
    $region10: #{tpu_custom_call.1} parent=1 // pred_check
      %p24 = pneg %p23
    $region11: #{tpu_custom_call.1} parent=1 // pred_check_branch
      %26 = sbr.rel (%p24) target = $region13
    $region12: #{tpu_custom_call.1} parent=1 // pred_region
      %27 = vst [vmem:[#allocation2] sm:$0xf] 0.0
      %28 = vst [vmem:[#allocation2 + $0x4] sm:$0xf] 0.0
    $region13: #{tpu_custom_call.1} parent=1 // pred_fallthru
      _
    %v29 = vld [vmem:[#allocation3] sm:$0xf]
    %v30 = vld [vmem:[#allocation3 + $0x6c] sm:$0xf]
    %v31 = vld [vmem:[#allocation3 + $0x4] sm:$0xf]
    %v32 = vld [vmem:[#allocation3 + $0x70] sm:$0xf]
    %v33 = vadd.f32 %v29, %v31
    %v34 = vadd.f32 %v30, %v32
    %v35 = vld [vmem:[#allocation3 + $0x8] sm:$0xf]
    %v36 = vld [vmem:[#allocation3 + $0x74] sm:$0xf]
    %v37 = vadd.f32 %v33, %v35
    %v38 = vadd.f32 %v34, %v36
    %v39 = vld [vmem:[#allocation3 + $0xc] sm:$0xf]
    %v40 = vld [vmem:[#allocation3 + $0x78] sm:$0xf]
    %v41 = vadd.f32 %v37, %v39
    %v42 = vadd.f32 %v38, %v40
    %v43 = vld [vmem:[#allocation3 + $0x10] sm:$0xf]
    %v44 = vld [vmem:[#allocation3 + $0x7c] sm:$0xf]
    %v45 = vadd.f32 %v41, %v43
    %v46 = vadd.f32 %v42, %v44
    %v47 = vld [vmem:[#allocation3 + $0x14] sm:$0xf]
    %v48 = vld [vmem:[#allocation3 + $0x80] sm:$0xf]
    %v49 = vadd.f32 %v45, %v47
    %v50 = vadd.f32 %v46, %v48
    %v51 = vld [vmem:[#allocation3 + $0x18] sm:$0xf]
    %v52 = vld [vmem:[#allocation3 + $0x84] sm:$0xf]
    %v53 = vadd.f32 %v49, %v51
    %v54 = vadd.f32 %v50, %v52
    %v55 = vld [vmem:[#allocation3 + $0x1c] sm:$0xf]
    %v56 = vld [vmem:[#allocation3 + $0x88] sm:$0xf]
    %v57 = vadd.f32 %v53, %v55
    %v58 = vadd.f32 %v54, %v56
    %v59 = vld [vmem:[#allocation3 + $0x20] sm:$0xf]
    %v60 = vld [vmem:[#allocation3 + $0x8c] sm:$0xf]
    %v61 = vadd.f32 %v57, %v59
    %v62 = vadd.f32 %v58, %v60
    %v63 = vld [vmem:[#allocation3 + $0x24] sm:$0xf]
    %v64 = vld [vmem:[#allocation3 + $0x90] sm:$0xf]
    %v65 = vadd.f32 %v61, %v63
    %v66 = vadd.f32 %v62, %v64
    %v67 = vld [vmem:[#allocation3 + $0x28] sm:$0xf]
    %v68 = vld [vmem:[#allocation3 + $0x94] sm:$0xf]
    %v69 = vadd.f32 %v65, %v67
    %v70 = vadd.f32 %v66, %v68
    %v71 = vld [vmem:[#allocation3 + $0x2c] sm:$0xf]
    %v72 = vld [vmem:[#allocation3 + $0x98] sm:$0xf]
    %v73 = vadd.f32 %v69, %v71
    %v74 = vadd.f32 %v70, %v72
    %v75 = vld [vmem:[#allocation3 + $0x30] sm:$0xf]
    %v76 = vld [vmem:[#allocation3 + $0x9c] sm:$0xf]
    %v77 = vadd.f32 %v73, %v75
    %v78 = vadd.f32 %v74, %v76
    %v79 = vld [vmem:[#allocation3 + $0x34] sm:$0xf]
    %v80 = vld [vmem:[#allocation3 + $0xa0] sm:$0xf]
    %v81 = vadd.f32 %v77, %v79
    %v82 = vadd.f32 %v78, %v80
    %v83 = vld [vmem:[#allocation3 + $0x38] sm:$0xf]
    %v84 = vld [vmem:[#allocation3 + $0xa4] sm:$0xf]
    %v85 = vadd.f32 %v81, %v83
    %v86 = vadd.f32 %v82, %v84
    %v87 = vld [vmem:[#allocation3 + $0x3c] sm:$0xf]
    %v88 = vld [vmem:[#allocation3 + $0xa8] sm:$0xf]
    %v89 = vadd.f32 %v85, %v87
    %v90 = vadd.f32 %v86, %v88
    %v91 = vld [vmem:[#allocation3 + $0x40] sm:$0xf]
    %v92 = vld [vmem:[#allocation3 + $0xac] sm:$0xf]
    %v93 = vadd.f32 %v89, %v91
    %v94 = vadd.f32 %v90, %v92
    %v95 = vld [vmem:[#allocation3 + $0x44] sm:$0xf]
    %v96 = vld [vmem:[#allocation3 + $0xb0] sm:$0xf]
    %v97 = vadd.f32 %v93, %v95
    %v98 = vadd.f32 %v94, %v96
    %v99 = vld [vmem:[#allocation3 + $0x48] sm:$0xf]
    %v100 = vld [vmem:[#allocation3 + $0xb4] sm:$0xf]
    %v101 = vadd.f32 %v97, %v99
    %v102 = vadd.f32 %v98, %v100
    %v103 = vld [vmem:[#allocation3 + $0x4c] sm:$0xf]
    %v104 = vld [vmem:[#allocation3 + $0xb8] sm:$0xf]
    %v105 = vadd.f32 %v101, %v103
    %v106 = vadd.f32 %v102, %v104
    %v107 = vld [vmem:[#allocation3 + $0x50] sm:$0xf]
    %v108 = vld [vmem:[#allocation3 + $0xbc] sm:$0xf]
    %v109 = vadd.f32 %v105, %v107
    %v110 = vadd.f32 %v106, %v108
    %v111 = vld [vmem:[#allocation3 + $0x54] sm:$0xf]
    %v112 = vld [vmem:[#allocation3 + $0xc0] sm:$0xf]
    %v113 = vadd.f32 %v109, %v111
    %v114 = vadd.f32 %v110, %v112
    %v115 = vld [vmem:[#allocation3 + $0x58] sm:$0xf]
    %v116 = vld [vmem:[#allocation3 + $0xc4] sm:$0xf]
    %v117 = vadd.f32 %v113, %v115
    %v118 = vadd.f32 %v114, %v116
    %v119 = vld [vmem:[#allocation3 + $0x5c] sm:$0xf]
    %v120 = vld [vmem:[#allocation3 + $0xc8] sm:$0xf]
    %v121 = vadd.f32 %v117, %v119
    %v122 = vadd.f32 %v118, %v120
    %v123 = vld [vmem:[#allocation3 + $0x60] sm:$0xf]
    %v124 = vld [vmem:[#allocation3 + $0xcc] sm:$0xf]
    %v125 = vadd.f32 %v121, %v123
    %v126 = vadd.f32 %v122, %v124
    %v127 = vld [vmem:[#allocation3 + $0x64] sm:$0xf]
    %v128 = vld [vmem:[#allocation3 + $0xd0] sm:$0xf]
    %v129 = vadd.f32 %v125, %v127
    %v130 = vadd.f32 %v126, %v128
    %v131 = vld [vmem:[#allocation3 + $0x68] sm:$0xf]
    %v132 = vld [vmem:[#allocation3 + $0xd4] sm:$0xf]
    %v133 = vlaneseq
    %v134 = vand.u32 %v133, 127
    %vm135 = vcmp.lt.s32.totalorder %v134, 32
    %v136 = vsel %vm135, %v131, 0.0
    %v137 = vsel %vm135, %v132, 0.0
    %v138 = vadd.f32 %v129, %v136
    %v139 = vadd.f32 %v130, %v137
    %v140 = vld [vmem:[#allocation2] sm:$0xf]
    %v141 = vld [vmem:[#allocation2 + $0x4] sm:$0xf]
    %v142 = vadd.f32 %v140, %v138
    %v143 = vadd.f32 %v141, %v139
    %144 = vst [vmem:[#allocation2] sm:$0xf] %v142
    %145 = vst [vmem:[#allocation2 + $0x4] sm:$0xf] %v143
    // Predicated region
    $region14: #{tpu_custom_call.1} parent=1 // pred_check
      %p146 = pneg %p23
    $region15: #{tpu_custom_call.1} parent=1 // pred_check_branch
      %148 = sbr.rel (%p146) target = $region17
    $region16: #{tpu_custom_call.1} parent=1 // pred_region
      %v149 = vld [vmem:[#allocation2] sm:$0xf]
      %v150 = vld [vmem:[#allocation2 + $0x4] sm:$0xf]
      %vm151 = vcmask 1043456
      %v152 = vsel %vm151, %v149, 0.0
      %153 = vadd.xlane.f32.xlu0 %v152
      %v154 = vpop.xlane.xlu0 %153
      %v155 = vsel %vm151, %v150, 0.0
      %156 = vadd.xlane.f32.xlu0 %v155
      %v157 = vpop.xlane.xlu0 %156
      %v158 = vmul.f32 %v154, 0.00029761906
      %v159 = vmul.f32 %v157, 0.00029761906
      %v162 = vlaneseq
      %v163 = vshrl.u32 %v162, 7
      %v164 = vsub.s32 %v134, %v163
      %v165 = vrot.slane %v158, %v164
      %v166 = vlaneseq
      %v167 = vshrl.u32 %v166, 7
      %v168 = vsub.s32 %v134, %v167
      %v169 = vrot.slane %v159, %v168
      %vm170 = vcmask 1041409
      %v171 = vsel %vm170, %v169, %v165
      %vm173 = vcmask 25600
      %174 = vst.msk [vmem:[#allocation6] sm:$0x3] %vm173, %v171
    $region17: #{tpu_custom_call.1} parent=1 // pred_fallthru
      _
    // Predicated region
    $region18: #{tpu_custom_call.1} parent=1 // pred_check
      _
    $region19: #{tpu_custom_call.1} parent=1 // pred_check_branch
      %176 = sbr.rel (0) target = $region21
    $region20: #{tpu_custom_call.1} parent=1 // pred_region
      %s178 = ssub.s32 32, 32
      %179 = vsyncadd [#allocation5], %s178
      %s181 = sshll.u32 [#allocation6], 4
      %s182 = int_to_ptr.vmem [resolvable:$true] %s181
      %184 = dma.vmem_to_hbm [thread:$0]  %s182, 32, %s1, [#allocation5]
    $region21: #{tpu_custom_call.1} parent=1 // pred_fallthru
      _
    // Predicated region
    $region22: #{tpu_custom_call.1} parent=1 // pred_check
      _
    $region23: #{tpu_custom_call.1} parent=1 // pred_check_branch
      %186 = sbr.rel (0) target = $region25
    $region24: #{tpu_custom_call.1} parent=1 // pred_region
      %187 = dma.done [#allocation5], 32
    $region25: #{tpu_custom_call.1} parent=1 // pred_fallthru
      _
    %188 = vsyncpa [#allocation4], 1
    %189 = vsyncpa [#allocation5], 1

</llo_original>
